<compile_context>
chip_gen: v5e
topology: v5e:2x2
jax: 0.10.0
libtpu: 0.0.40
codegen_flags: <defaults>
</compile_context>

<pallas_src>
import jax
import jax.numpy as jnp
from jax.experimental import pallas as pl
from jax.experimental.pallas import tpu as pltpu

# ---- scaled-down configuration (stand-ins for the real module's dims) ----
B = 2            # batch
S = 8            # sequence length
MAX_LEN = 16     # max_length (truncation path)
TOK_VOCAB = 64   # token-embedding vocab (stand-in for the phi-2 tokenizer vocab)
H = 128          # hidden dim (stand-in for 2560)
V = 256          # logits dim == image-projection target_dim (so the broadcast-add is valid)
C_CLIP = 64      # CLIP embedding dim (stand-in for 512)
TM = 8           # M tile (rows of B*S); 256-512 at real sizes (multiples of 256 on v6e/v7x MXU)
TN = 128         # lane-dense V tile; ~1024 on v7x, 1024-2048 on v5e/v6e at real V


# ---------------------------------------------------------------------------
# Fused kernel: one MXU matmul + bias per (M, V) tile, one unmasked lane-dense store
# ---------------------------------------------------------------------------
def _matmul_bias_kernel(h_ref, w_ref, bias_ref, o_ref):
    # h_ref:(TM, H+C) bf16 | w_ref:(H+C, TN) bf16 | bias_ref:(1, TN) f32 | o_ref:(TM, TN) f32
    o_ref[...] = (
        jnp.dot(h_ref[...], w_ref[...], preferred_element_type=jnp.float32)
        + bias_ref[...]
    )


def fused_logits(h_aug, w_aug, bias, tm=TM, tn=TN):
    m, k = h_aug.shape
    _, v = w_aug.shape
    return pl.pallas_call(
        _matmul_bias_kernel,
        out_shape=jax.ShapeDtypeStruct((m, v), jnp.float32),
        grid_spec=pltpu.PrefetchScalarGridSpec(
            num_scalar_prefetch=0,
            # M outer, V inner: weight tile streams across V for each M row, the (TM, H+C)
            # activation tile stays resident across the inner axis (block index unchanged).
            grid=(m // tm, v // tn),
            in_specs=[
                pl.BlockSpec((tm, k), lambda i, j: (i, 0)),   # bf16 augmented activations
                pl.BlockSpec((k, tn), lambda i, j: (0, j)),   # fused bf16 weight (LM head + proj)
                pl.BlockSpec((1, tn), lambda i, j: (0, j)),   # fused bias (b_head + b_proj)
            ],
            out_specs=pl.BlockSpec((tm, tn), lambda i, j: (i, j)),  # lane-dense output blocks
        ),
        compiler_params=pltpu.CompilerParams(
            dimension_semantics=("parallel", "parallel"),      # no reduction axis; megacore splits
            vmem_limit_bytes=48 * 1024 * 1024,                 # explicit; leaves headroom on v7x
        ),
    )(h_aug, w_aug, bias)


# ---------------------------------------------------------------------------
# Forward pass (mirrors MultiModalLLM.forward)
# ---------------------------------------------------------------------------
def multimodal_llm_forward(params, input_ids, attention_mask=None, image_features=None,
                           max_length=MAX_LEN):
    # truncation: input_ids[:, :max_length]
    if input_ids.shape[1] > max_length:
        input_ids = input_ids[:, :max_length]
        if attention_mask is not None:
            attention_mask = attention_mask[:, :max_length]
    bsz, seq = input_ids.shape
    hid = params["tok_emb"].shape[1]
    c = params["wq_t"].shape[0]
    v = params["w_aug"].shape[1]

    # TODO(synk): the real phi-2 transformer (8-bit base + LoRA) is replaced by a synthetic
    # token-embedding "base model"; the mask multiply stands in for attention masking.  At real
    # sizes the embedding gather would be fused via scalar-prefetched ids + Element row-gather.
    hidden = jnp.take(params["tok_emb"], input_ids, axis=0)            # (B, S, H) f32
    if attention_mask is not None:
        hidden = hidden * attention_mask[..., None].astype(hidden.dtype)
    # mask-multiply + bf16 cast hoisted OUT of the kernel (done once, not once per V tile)
    h_bf16 = hidden.reshape(bsz * seq, hid).astype(jnp.bfloat16)       # (B*S, H) bf16

    if image_features is not None:
        # broadcast CLIP features onto every sequence row of the augmented LHS; the folded
        # weight columns then reproduce `logits += projected_image.unsqueeze(1)` exactly.
        x_rep = jnp.broadcast_to(
            image_features.astype(jnp.bfloat16)[:, None, :], (bsz, seq, c)
        ).reshape(bsz * seq, c)
        bias = (params["b_head"].reshape(1, v) + params["bias_proj"]).astype(jnp.float32)
    else:
        x_rep = jnp.zeros((bsz * seq, c), jnp.bfloat16)
        bias = params["b_head"].reshape(1, v).astype(jnp.float32)

    h_aug = jnp.concatenate([h_bf16, x_rep], axis=1)                   # (B*S, H+C) bf16

    logits2d = fused_logits(h_aug, params["w_aug"], bias)
    return logits2d.reshape(bsz, seq, v)


# pure-JAX reference (mirrors the kernel's bf16-input / f32-accumulate precision)
def reference_forward(params, input_ids, attention_mask, image_features):
    hidden = params["tok_emb"][input_ids] * attention_mask[..., None]
    logits = jnp.einsum("bsh,hv->bsv", hidden.astype(jnp.bfloat16), params["w_head_bf16"],
                        preferred_element_type=jnp.float32)
    w_proj_bf16 = (params["wq_t"].astype(jnp.float32) * params["scale_row"]).astype(jnp.bfloat16)
    proj = jnp.dot(image_features.astype(jnp.bfloat16), w_proj_bf16,
                   preferred_element_type=jnp.float32) + params["bias_proj"]
    return logits + params["b_head"] + proj[:, None, :]


def init_params(key):
    k1, k2, k3, k4, k5 = jax.random.split(key, 5)
    tok_emb = jax.random.normal(k1, (TOK_VOCAB, H), jnp.float32) * 0.02
    w_head = (jax.random.normal(k2, (H, V), jnp.float32) * 0.02).astype(jnp.bfloat16)
    b_head = jax.random.normal(k5, (V,), jnp.float32) * 0.01
    # bnb-style Int8Linear: weight (out, in) int8 with per-output-channel scale
    w_proj = jax.random.normal(k3, (V, C_CLIP), jnp.float32) * 0.02
    b_proj = jax.random.normal(k4, (V,), jnp.float32) * 0.01
    scale = jnp.max(jnp.abs(w_proj), axis=1, keepdims=True) / 127.0     # (V, 1)
    wq = jnp.round(w_proj / scale).astype(jnp.int8)                     # (V, C) int8
    wq_t = wq.T                                                         # (C, V)
    scale_row = scale.T                                                 # (1, V)
    # One-time weight prep: fold scale*dequant(int8) into the LM-head weight along K.
    w_proj_bf16 = (wq_t.astype(jnp.float32) * scale_row).astype(jnp.bfloat16)   # (C, V)
    w_aug = jnp.concatenate([w_head, w_proj_bf16], axis=0)              # (H+C, V) bf16
    return {
        "tok_emb": tok_emb,
        "w_head_bf16": w_head,
        "b_head": b_head,
        "wq_t": wq_t,
        "scale_row": scale_row,
        "bias_proj": b_proj.reshape(1, V),
        "w_aug": w_aug,                  # fused kernel weight (LM head + dequantized projection)
    }


if __name__ == "__main__":
    key = jax.random.PRNGKey(0)
    kp, ki, km, kf = jax.random.split(key, 4)

    params = init_params(kp)
    input_ids = jax.random.randint(ki, (B, S), 0, TOK_VOCAB, dtype=jnp.int32)
    attention_mask = jnp.ones((B, S), jnp.float32).at[:, -2:].set(0.0)
    image_features = jax.random.normal(kf, (B, C_CLIP), jnp.float32)

    logits = multimodal_llm_forward(params, input_ids, attention_mask, image_features)
    logits = jax.block_until_ready(logits)

    ref = reference_forward(params, input_ids, attention_mask, image_features)
    assert logits.shape == (B, S, V)
    assert jnp.allclose(logits, ref, rtol=1e-3, atol=1e-4), "mismatch vs reference"

    print("KERNEL_OK")
</pallas_src>

<mosaic_0001>
module attributes {stable_mosaic.version = 11 : i64} {
  func.func @_matmul_bias_kernel(%arg0: i32, %arg1: i32, %arg2: memref<8x192xbf16, #tpu.memory_space<vmem>>, %arg3: memref<192x128xbf16, #tpu.memory_space<vmem>>, %arg4: memref<1x128xf32, #tpu.memory_space<vmem>>, %arg5: memref<8x128xf32, #tpu.memory_space<vmem>>) attributes {dimension_semantics = [#tpu.dimension_semantics<parallel>, #tpu.dimension_semantics<parallel>], iteration_bounds = array<i64: 2, 2>, scalar_prefetch = 0 : i64, scratch_operands = 0 : i64, tpu.core_type = #tpu.core_type<tc>, window_params = [{transform_indices = @transform_0, window_bounds = array<i64: 8, 192>}, {transform_indices = @transform_1, window_bounds = array<i64: 192, 128>}, {transform_indices = @transform_2, window_bounds = array<i64: 1, 128>}, {transform_indices = @transform_3, window_bounds = array<i64: 8, 128>}]} {
    %c0 = arith.constant 0 : index
    %c0_0 = arith.constant 0 : index
    %0 = vector.load %arg2[%c0, %c0_0] : memref<8x192xbf16, #tpu.memory_space<vmem>>, vector<8x192xbf16>
    %c0_1 = arith.constant 0 : index
    %c0_2 = arith.constant 0 : index
    %1 = vector.load %arg3[%c0_1, %c0_2] : memref<192x128xbf16, #tpu.memory_space<vmem>>, vector<192x128xbf16>
    %cst = arith.constant dense<0.000000e+00> : vector<8x128xf32>
    %2 = tpu.matmul %0, %1, %cst {dimension_numbers = #tpu.dot_dimension_numbers<[1], [0], [0], [1], [0, 0, 1, 1], [], []>} : vector<8x192xbf16>, vector<192x128xbf16>, vector<8x128xf32> -> vector<8x128xf32>
    %c0_3 = arith.constant 0 : index
    %c0_4 = arith.constant 0 : index
    %3 = vector.load %arg4[%c0_3, %c0_4] : memref<1x128xf32, #tpu.memory_space<vmem>>, vector<1x128xf32>
    %4 = vector.broadcast %3 : vector<1x128xf32> to vector<8x128xf32>
    %5 = arith.addf %2, %4 : vector<8x128xf32>
    %c0_5 = arith.constant 0 : index
    %c0_6 = arith.constant 0 : index
    %6 = vector.load %arg5[%c0_5, %c0_6] : memref<8x128xf32, #tpu.memory_space<vmem>>, vector<8x128xf32>
    tpu.vector_store %arg5[%c0_5, %c0_6], %5 {strides = array<i32>} : memref<8x128xf32, #tpu.memory_space<vmem>>, vector<8x128xf32>,
    return
  }
  func.func @transform_0(%arg0: i32, %arg1: i32) -> (i32, i32) {
    %c0_i32 = arith.constant 0 : i32
    %c0_i32_0 = arith.constant 0 : i32
    return %arg0, %c0_i32 : i32, i32
  }
  func.func @transform_1(%arg0: i32, %arg1: i32) -> (i32, i32) {
    %c0_i32 = arith.constant 0 : i32
    %c0_i32_0 = arith.constant 0 : i32
    return %c0_i32, %arg1 : i32, i32
  }
  func.func @transform_2(%arg0: i32, %arg1: i32) -> (i32, i32) {
    %c0_i32 = arith.constant 0 : i32
    %c0_i32_0 = arith.constant 0 : i32
    return %c0_i32, %arg1 : i32, i32
  }
  func.func @transform_3(%arg0: i32, %arg1: i32) -> (i32, i32) {
    %c0_i32 = arith.constant 0 : i32
    return %arg0, %arg1 : i32, i32
  }
}

</mosaic_0001>

<llo_original>
// kernel: tpu_custom_call.1
$region0: #{tpu_custom_call.1}
  #allocation0 [shape = 'u32[]', space=smem, size = 0x4, offset = 0x4, fixed_abs, tag = 'smem constant byte address 0x4 - core index']
  #allocation1 [shape = 'u32[72,128]{1,0:T(1,128)}', space=vmem, size = 0x9000, scoped, tag = 'internal scratch']
  %s0 = inlined_call_operand.hbm [shape: bf16[16,192], index: 0, kind: input, shape index: {}]
  %s1 = inlined_call_operand.hbm [shape: bf16[192,256], index: 1, kind: input, shape index: {}]
  %s2 = inlined_call_operand.hbm [shape: f32[1,256], index: 2, kind: input, shape index: {}]
  %s3 = inlined_call_operand.hbm [shape: f32[16,256], index: 3, kind: output, shape index: {}]
  %s4 = sld [smem:[#allocation0]]
  $region57: #{tpu_custom_call.1} parent=0
    _
  %s6 = ssub.s32 1, %s4
  %s7 = scalar_select 0, %s6, %s4
  $region1: #{tpu_custom_call.1} parent=0
    #allocation2 [shape = 'u8[8192]{0}', space=vmem, size = 0x2000, scoped, tag = 'input window, operand 0']
    #allocation3 [shape = 's32[2]{0}', space=sflag, size = 0x8, scoped, tag = 'scoped memory for tpu_custom_call.1']
    #allocation4 [shape = 's32[2]{0}', space=sflag, size = 0x8, scoped, tag = 'scoped memory for tpu_custom_call.1']
    #allocation5 [shape = 'u8[98304]{0}', space=vmem, size = 0x18000, scoped, tag = 'input window, operand 1']
    #allocation6 [shape = 's32[2]{0}', space=sflag, size = 0x8, scoped, tag = 'scoped memory for tpu_custom_call.1']
    #allocation7 [shape = 'u8[1024]{0}', space=vmem, size = 0x400, scoped, tag = 'input window, operand 2']
    #allocation8 [shape = 'u8[8192]{0}', space=vmem, size = 0x2000, scoped, tag = 'output window, operand 0']
    %8 = vsyncpa [#allocation3], 0
    %s9 = scalar_lea.sflag [#allocation3], 1
    %10 = vsyncpa %s9, 0
    %11 = vsyncpa [#allocation6], 0
    %s12 = scalar_lea.sflag [#allocation6], 1
    %13 = vsyncpa %s12, 0
    %14 = vsyncpa [#allocation4], 0
    %s15 = scalar_lea.sflag [#allocation4], 1
    %16 = vsyncpa %s15, 0
    loop: start=0, step=1, limit=6
    $region2: #{tpu_custom_call.1} parent=1 // loop_pre_header
      _
    $region3: #{tpu_custom_call.1} parent=1 // loop_header
      %s18 = sphi 0, %s22
      %p19 = scmp.ge.s32.totalorder %s18, 6
      %s25 = sphi 0, %s37
      %s26 = sphi 0, %s33
      %s27 = sphi 0, %s25
      %s28 = sphi 0, %s26
      %s29 = sphi 0, %s27
      %s30 = sphi 0, %s28
      %s40 = sphi 0, %s42
      %s43 = sphi 0, %s40
      %s44 = sphi 0, %s43
      %s60 = sphi 0, %s44
      %s66 = sphi 0, %s68
      %s69 = sphi 0, %s66
      %s70 = sphi 0, %s69
      %s86 = sphi 0, %s70
      %s92 = sphi 0, %s94
      %s95 = sphi 0, %s92
      %s96 = sphi 0, %s95
      %s112 = sphi 0, %s96
      %s120 = sphi 0, %s122
      %s123 = sphi 0, %s120
      %s124 = sphi 0, %s123
      %s140 = sphi 0, %s124
    $region4: #{tpu_custom_call.1} parent=1 // loop_header_branch
      %21 = sbr.rel (%p19) target = $region8
    $region5: #{tpu_custom_call.1} parent=1 // loop_body
      %s23 = ssub.s32 %s18, 1
      %s24 = ssub.s32 %s18, 2
      %s31 = sadd.s32 1, %s26
      %p32 = scmp.ge.s32.totalorder %s31, 2
      %s33 = scalar_select %p32, 0, %s31
      %s34 = sadd.s32 1, %s25
      %s35 = scalar_select %p32, %s34, %s25
      %p36 = scmp.ge.s32.totalorder %s35, 2
      %s37 = scalar_select %p36, 0, %s35
      %s38 = ssub.s32 %s25, %s37
      %p39 = scmp.eq.s32.totalorder %s38, 0
      %s41 = sadd.s32 %s40, 1
      %s42 = scalar_select %p39, %s40, %s41
      %p45 = pneg %p39
      %p46 = scmp.eq.s32.totalorder %s18, 3
      %p47 = por %p45, %p46
      %p48 = scmp.ne.s32.totalorder %s40, %s43
      %p49 = scmp.eq.s32.totalorder %s18, 0
      %p50 = por %p48, %p49
      %p51 = scmp.ne.s32.totalorder %s40, %s43
      %p52 = scmp.eq.s32.totalorder %s23, 3
      %p53 = por %p51, %p52
      %p54 = scmp.ne.s32.totalorder %s43, %s44
      %p55 = scmp.eq.s32.totalorder %s23, 0
      %p56 = por %p54, %p55
      %p57 = scmp.ne.s32.totalorder %s43, %s44
      %p58 = scmp.eq.s32.totalorder %s24, 3
      %p59 = por %p57, %p58
      %p61 = scmp.ne.s32.totalorder %s44, %s60
      %p62 = scmp.eq.s32.totalorder %s24, 0
      %p63 = por %p61, %p62
      %s64 = ssub.s32 %s26, %s33
      %p65 = scmp.eq.s32.totalorder %s64, 0
      %s67 = sadd.s32 %s66, 1
      %s68 = scalar_select %p65, %s66, %s67
      %p71 = pneg %p65
      %p72 = scmp.eq.s32.totalorder %s18, 3
      %p73 = por %p71, %p72
      %p74 = scmp.ne.s32.totalorder %s66, %s69
      %p75 = scmp.eq.s32.totalorder %s18, 0
      %p76 = por %p74, %p75
      %p77 = scmp.ne.s32.totalorder %s66, %s69
      %p78 = scmp.eq.s32.totalorder %s23, 3
      %p79 = por %p77, %p78
      %p80 = scmp.ne.s32.totalorder %s69, %s70
      %p81 = scmp.eq.s32.totalorder %s23, 0
      %p82 = por %p80, %p81
      %p83 = scmp.ne.s32.totalorder %s69, %s70
      %p84 = scmp.eq.s32.totalorder %s24, 3
      %p85 = por %p83, %p84
      %p87 = scmp.ne.s32.totalorder %s70, %s86
      %p88 = scmp.eq.s32.totalorder %s24, 0
      %p89 = por %p87, %p88
      %s90 = ssub.s32 %s26, %s33
      %p91 = scmp.eq.s32.totalorder %s90, 0
      %s93 = sadd.s32 %s92, 1
      %s94 = scalar_select %p91, %s92, %s93
      %p97 = pneg %p91
      %p98 = scmp.eq.s32.totalorder %s18, 3
      %p99 = por %p97, %p98
      %p100 = scmp.ne.s32.totalorder %s92, %s95
      %p101 = scmp.eq.s32.totalorder %s18, 0
      %p102 = por %p100, %p101
      %p103 = scmp.ne.s32.totalorder %s92, %s95
      %p104 = scmp.eq.s32.totalorder %s23, 3
      %p105 = por %p103, %p104
      %p106 = scmp.ne.s32.totalorder %s95, %s96
      %p107 = scmp.eq.s32.totalorder %s23, 0
      %p108 = por %p106, %p107
      %p109 = scmp.ne.s32.totalorder %s95, %s96
      %p110 = scmp.eq.s32.totalorder %s24, 3
      %p111 = por %p109, %p110
      %p113 = scmp.ne.s32.totalorder %s96, %s112
      %p114 = scmp.eq.s32.totalorder %s24, 0
      %p115 = por %p113, %p114
      %s116 = ssub.s32 %s25, %s37
      %s117 = ssub.s32 %s26, %s33
      %s118 = sor.u32 %s116, %s117
      %p119 = scmp.eq.s32.totalorder %s118, 0
      %s121 = sadd.s32 %s120, 1
      %s122 = scalar_select %p119, %s120, %s121
      %p125 = pneg %p119
      %p126 = scmp.eq.s32.totalorder %s18, 3
      %p127 = por %p125, %p126
      %p128 = scmp.ne.s32.totalorder %s120, %s123
      %p129 = scmp.eq.s32.totalorder %s18, 0
      %p130 = por %p128, %p129
      %p131 = scmp.ne.s32.totalorder %s120, %s123
      %p132 = scmp.eq.s32.totalorder %s23, 3
      %p133 = por %p131, %p132
      %p134 = scmp.ne.s32.totalorder %s123, %s124
      %p135 = scmp.eq.s32.totalorder %s23, 0
      %p136 = por %p134, %p135
      %p137 = scmp.ne.s32.totalorder %s123, %s124
      %p138 = scmp.eq.s32.totalorder %s24, 3
      %p139 = por %p137, %p138
      %p141 = scmp.ne.s32.totalorder %s124, %s140
      %p142 = scmp.eq.s32.totalorder %s24, 0
      %p143 = por %p141, %p142
      %p144 = scmp.le.s32.totalorder 1, %s18
      %p145 = scmp.lt.s32.totalorder %s18, 5
      %p146 = pnand %p144, %p145
      %p147 = pneg %p146
      // Predicated region
      $region9: #{tpu_custom_call.1} parent=5 // pred_check
        _
      $region10: #{tpu_custom_call.1} parent=5 // pred_check_branch
        %149 = sbr.rel (%p146) target = $region12
      $region11: #{tpu_custom_call.1} parent=5 // pred_region
        %s150 = ssub.s32 %s18, 1
      $region12: #{tpu_custom_call.1} parent=5 // pred_fallthru
        _
      %p151 = scmp.lt.s32.totalorder %s18, 4
      // Predicated region
      $region13: #{tpu_custom_call.1} parent=5 // pred_check
        %p152 = pneg %p151
      $region14: #{tpu_custom_call.1} parent=5 // pred_check_branch
        %154 = sbr.rel (%p152) target = $region16
      $region15: #{tpu_custom_call.1} parent=5 // pred_region
        // Predicated region
        $region17: #{tpu_custom_call.1} parent=15 // pred_check
          %p155 = pneg %p50
        $region18: #{tpu_custom_call.1} parent=15 // pred_check_branch
          %157 = sbr.rel (%p155) target = $region20
        $region19: #{tpu_custom_call.1} parent=15 // pred_region
          %s158 = sand.u32 %s40, 1
          %s159 = scalar_lea.sflag [#allocation3], %s158
          %s160 = sand.u32 %s40, 1
          %s161 = smul.addr %s160, 8
          %s162 = scalar_lea.vmem [#allocation2], %s161
          %164 = vsyncadd %s159, 0
          %s165 = smul.addr %s25, 2
          %s166 = smul.addr %s165, 4
          %s167 = scalar_lea.hbm %s0, %s166
          %s169 = sshll.u32 %s167, 4
          %s170 = int_to_ptr.hbm [resolvable:$true] %s169
          %s171 = sshll.u32 %s162, 4
          %s172 = int_to_ptr.vmem [resolvable:$true] %s171
          %174 = dma.hbm_to_vmem [thread:$0]  %s170, 128, %s172, %s159
        $region20: #{tpu_custom_call.1} parent=15 // pred_fallthru
          _
        // Predicated region
        $region21: #{tpu_custom_call.1} parent=15 // pred_check
          %p175 = pneg %p76
        $region22: #{tpu_custom_call.1} parent=15 // pred_check_branch
          %177 = sbr.rel (%p175) target = $region24
        $region23: #{tpu_custom_call.1} parent=15 // pred_region
          %s178 = sand.u32 %s18, 1
          %s179 = scalar_lea.sflag [#allocation6], %s178
          %s180 = sand.u32 %s66, 1
          %s181 = smul.addr %s180, 96
          %s182 = scalar_lea.vmem [#allocation5], %s181
          %184 = vsyncadd %s179, 0
          %s185 = smul.addr %s26, 4
          %s186 = scalar_lea.hbm %s1, %s185
          %s187 = sshll.u32 %s186, 4
          %s188 = int_to_ptr.hbm [resolvable:$true] %s187
          %s189 = sshll.u32 %s182, 4
          %s190 = int_to_ptr.vmem [resolvable:$true] %s189
          %195 = dma.hbm_to_vmem [thread:$0]  %s188, 1536, %s190, %s179, 128, 64, 4
        $region24: #{tpu_custom_call.1} parent=15 // pred_fallthru
          _
        // Predicated region
        $region25: #{tpu_custom_call.1} parent=15 // pred_check
          %p196 = pneg %p102
        $region26: #{tpu_custom_call.1} parent=15 // pred_check_branch
          %198 = sbr.rel (%p196) target = $region28
        $region27: #{tpu_custom_call.1} parent=15 // pred_region
          %s199 = sand.u32 %s18, 1
          %s200 = scalar_lea.sflag [#allocation6], %s199
          %s201 = sand.u32 %s92, 1
          %s202 = scalar_lea.vmem [#allocation7], %s201
          %204 = vsyncadd %s200, 0
          %s205 = scalar_lea.hbm %s2, %s26
          %s207 = sshll.u32 %s205, 4
          %s208 = int_to_ptr.hbm [resolvable:$true] %s207
          %s209 = sshll.u32 %s202, 4
          %s210 = int_to_ptr.vmem [resolvable:$true] %s209
          %212 = dma.hbm_to_vmem [thread:$0]  %s208, 16, %s210, %s200
        $region28: #{tpu_custom_call.1} parent=15 // pred_fallthru
          _
      $region16: #{tpu_custom_call.1} parent=5 // pred_fallthru
        _
      %p213 = scmp.le.s32.totalorder 1, %s18
      %p214 = scmp.lt.s32.totalorder %s18, 5
      %p215 = pnand %p213, %p214
      %p216 = pneg %p215
      // Predicated region
      $region29: #{tpu_custom_call.1} parent=5 // pred_check
        _
      $region30: #{tpu_custom_call.1} parent=5 // pred_check_branch
        %218 = sbr.rel (%p215) target = $region32
      $region31: #{tpu_custom_call.1} parent=5 // pred_region
        %s219 = ssub.s32 %s18, 1
        %s220 = sand.u32 %s43, 1
        %s221 = scalar_lea.sflag [#allocation3], %s220
        %s222 = sand.u32 %s43, 1
        %s223 = smul.addr %s222, 8
        %s224 = scalar_lea.vmem [#allocation2], %s223
        // Predicated region
        $region33: #{tpu_custom_call.1} parent=31 // pred_check
          %p225 = pneg %p56
        $region34: #{tpu_custom_call.1} parent=31 // pred_check_branch
          %227 = sbr.rel (%p225) target = $region36
        $region35: #{tpu_custom_call.1} parent=31 // pred_region
          %229 = dma.done %s221, 128
        $region36: #{tpu_custom_call.1} parent=31 // pred_fallthru
          _
        %s230 = sand.u32 %s23, 1
        %s231 = scalar_lea.sflag [#allocation6], %s230
        %s232 = sand.u32 %s69, 1
        %s233 = smul.addr %s232, 96
        %s234 = scalar_lea.vmem [#allocation5], %s233
        // Predicated region
        $region37: #{tpu_custom_call.1} parent=31 // pred_check
          %p235 = pneg %p82
        $region38: #{tpu_custom_call.1} parent=31 // pred_check_branch
          %237 = sbr.rel (%p235) target = $region40
        $region39: #{tpu_custom_call.1} parent=31 // pred_region
          %239 = dma.done %s231, 1536
        $region40: #{tpu_custom_call.1} parent=31 // pred_fallthru
          _
        %s240 = sand.u32 %s23, 1
        %s241 = scalar_lea.sflag [#allocation6], %s240
        %s242 = sand.u32 %s95, 1
        %s243 = scalar_lea.vmem [#allocation7], %s242
        // Predicated region
        $region41: #{tpu_custom_call.1} parent=31 // pred_check
          %p244 = pneg %p108
        $region42: #{tpu_custom_call.1} parent=31 // pred_check_branch
          %246 = sbr.rel (%p244) target = $region44
        $region43: #{tpu_custom_call.1} parent=31 // pred_region
          %248 = dma.done %s241, 16
        $region44: #{tpu_custom_call.1} parent=31 // pred_fallthru
          _
        %s249 = sand.u32 %s43, 1
        %s250 = scalar_lea.sflag [#allocation3], %s249
        %s251 = sand.u32 %s43, 1
        %s252 = smul.addr %s251, 8
        %s253 = scalar_lea.vmem [#allocation2], %s252
        %p254 = pneg %p56
        %p255 = pneg %p53
        %s256 = sand.u32 %s23, 1
        %s257 = scalar_lea.sflag [#allocation6], %s256
        %s258 = sand.u32 %s69, 1
        %s259 = smul.addr %s258, 96
        %s260 = scalar_lea.vmem [#allocation5], %s259
        %p261 = pneg %p82
        %p262 = pneg %p79
        %s263 = sand.u32 %s23, 1
        %s264 = scalar_lea.sflag [#allocation6], %s263
        %s265 = sand.u32 %s95, 1
        %s266 = scalar_lea.vmem [#allocation7], %s265
        %p267 = pneg %p108
        %p268 = pneg %p105
        %p269 = pneg %p136
        %p270 = pneg %p133
        %s271 = sand.u32 %s123, 1
        %s272 = scalar_lea.sflag [#allocation4], %s271
        %s273 = sand.u32 %s123, 1
        %s274 = smul.addr %s273, 8
        %s275 = scalar_lea.vmem [#allocation8], %s274
        %v277 = vld [vmem:[%s224] sm:$0xff]
        %v278 = vld [vmem:[%s234] sm:$0xf]
        %v279 = vld [vmem:[%s234 + $0x4] sm:$0xf]
        %v280 = vld [vmem:[%s234 + $0x8] sm:$0xf]
        %v281 = vld [vmem:[%s234 + $0xc] sm:$0xf]
        %v282 = vld [vmem:[%s234 + $0x10] sm:$0xf]
        %v283 = vld [vmem:[%s234 + $0x14] sm:$0xf]
        %v284 = vld [vmem:[%s234 + $0x18] sm:$0xf]
        %v285 = vld [vmem:[%s234 + $0x1c] sm:$0xf]
        %v286 = vld [vmem:[%s234 + $0x20] sm:$0xf]
        %v287 = vld [vmem:[%s234 + $0x24] sm:$0xf]
        %v288 = vld [vmem:[%s234 + $0x28] sm:$0xf]
        %v289 = vld [vmem:[%s234 + $0x2c] sm:$0xf]
        %v290 = vld [vmem:[%s234 + $0x30] sm:$0xf]
        %v291 = vld [vmem:[%s234 + $0x34] sm:$0xf]
        %v292 = vld [vmem:[%s234 + $0x38] sm:$0xf]
        %v293 = vld [vmem:[%s234 + $0x3c] sm:$0xf]
        %v294 = vld [vmem:[%s234 + $0x40] sm:$0xf]
        %v295 = vld [vmem:[%s234 + $0x44] sm:$0xf]
        %v296 = vld [vmem:[%s234 + $0x48] sm:$0xf]
        %v297 = vld [vmem:[%s234 + $0x4c] sm:$0xf]
        %v298 = vld [vmem:[%s234 + $0x50] sm:$0xf]
        %v299 = vld [vmem:[%s234 + $0x54] sm:$0xf]
        %v300 = vld [vmem:[%s234 + $0x58] sm:$0xf]
        %v301 = vld [vmem:[%s234 + $0x5c] sm:$0xf]
        %v302 = vld [vmem:[%s243] sm:$0x1]
        %v304 = vperm.slane %v302, 0
        %v307 = vunpack.c.l.b16 %v277
        %v308 = vunpack.c.h.b16 %v277
        %v309 = vpack.c.b16 %v307, %v307
        %v310 = vpack.c.b16 %v308, %v308
        %v336 = vunpack.c.l.b16 %v278
        %v337 = vunpack.c.l.b16 %v279
        %v338 = vunpack.c.l.b16 %v280
        %v339 = vunpack.c.l.b16 %v281
        %v340 = vunpack.c.l.b16 %v282
        %v341 = vunpack.c.l.b16 %v283
        %v342 = vunpack.c.l.b16 %v284
        %v343 = vunpack.c.l.b16 %v285
        %v344 = vunpack.c.l.b16 %v286
        %v345 = vunpack.c.l.b16 %v287
        %v346 = vunpack.c.l.b16 %v288
        %v347 = vunpack.c.l.b16 %v289
        %v348 = vunpack.c.l.b16 %v290
        %v349 = vunpack.c.l.b16 %v291
        %v350 = vunpack.c.l.b16 %v292
        %v351 = vunpack.c.l.b16 %v293
        %v352 = vunpack.c.l.b16 %v294
        %v353 = vunpack.c.l.b16 %v295
        %v354 = vunpack.c.l.b16 %v296
        %v355 = vunpack.c.l.b16 %v297
        %v356 = vunpack.c.l.b16 %v298
        %v357 = vunpack.c.l.b16 %v299
        %v358 = vunpack.c.l.b16 %v300
        %v359 = vunpack.c.l.b16 %v301
        %v360 = vpack.c.b16 %v337, %v336
        %v361 = vpack.c.b16 %v339, %v338
        %v362 = vpack.c.b16 %v341, %v340
        %v363 = vpack.c.b16 %v343, %v342
        %v364 = vpack.c.b16 %v345, %v344
        %v365 = vpack.c.b16 %v347, %v346
        %v366 = vpack.c.b16 %v349, %v348
        %v367 = vpack.c.b16 %v351, %v350
        %v368 = vpack.c.b16 %v353, %v352
        %v369 = vpack.c.b16 %v355, %v354
        %v370 = vpack.c.b16 %v357, %v356
        %v371 = vpack.c.b16 %v359, %v358
        %vm384 = vcmask 523264
        %v386 = vsel %vm384, %v310, 0
        %388 = vmatpush.bf16.msra.mxu0 %v367
        %389 = vmatpush.bf16.msra.mxu0 %v366
        %390 = vmatpush.bf16.msra.mxu0 %v365
        %391 = vmatpush.bf16.msra.mxu0 %v364
        %392 = vmatpush.bf16.msra.mxu0 %v363
        %393 = vmatpush.bf16.msra.mxu0 %v362
        %394 = vmatpush.bf16.msra.mxu0 %v361
        %395 = vmatpush.bf16.msra.mxu0 %v360
        %396 = vmatmul.bf16.gmra.mxu0 %v309
        %v397 = vpop.f32.mrf.mxu0
        %v398 = vadd.f32 %v304, %v397
        %v399 = vpop.f32.mrf.mxu0
        %400 = vdwg.mxu0
        %401 = vmatpush.bf16.msra.mxu0 0
        %402 = vmatpush.bf16.msra.mxu0 0
        %403 = vmatpush.bf16.msra.mxu0 0
        %404 = vmatpush.bf16.msra.mxu0 0
        %405 = vmatpush.bf16.msra.mxu0 %v371
        %406 = vmatpush.bf16.msra.mxu0 %v370
        %407 = vmatpush.bf16.msra.mxu0 %v369
        %408 = vmatpush.bf16.msra.mxu0 %v368
        %409 = vmatmul.bf16.gmra.mxu0 %v386
        %v410 = vpop.f32.mrf.mxu0
        %v411 = vadd.f32 %v398, %v410
        %v412 = vpop.f32.mrf.mxu0
        %413 = vdwg.mxu0
        %414 = vst [vmem:[%s275] sm:$0xff] %v411
        %s415 = sand.u32 %s123, 1
        %s416 = scalar_lea.sflag [#allocation4], %s415
        %s417 = sand.u32 %s123, 1
        %s418 = smul.addr %s417, 8
        %s419 = scalar_lea.vmem [#allocation8], %s418
        // Predicated region
        $region45: #{tpu_custom_call.1} parent=31 // pred_check
          %p420 = pneg %p133
        $region46: #{tpu_custom_call.1} parent=31 // pred_check_branch
          %422 = sbr.rel (%p420) target = $region48
        $region47: #{tpu_custom_call.1} parent=31 // pred_region
          %424 = vsyncadd %s416, 0
          %s425 = smul.addr %s27, 2
          %s426 = sadd.s32 %s28, %s425
          %s427 = smul.addr %s426, 8
          %s428 = scalar_lea.hbm %s3, %s427
          %s430 = sshll.u32 %s419, 4
          %s431 = int_to_ptr.vmem [resolvable:$true] %s430
          %s432 = sshll.u32 %s428, 4
          %s433 = int_to_ptr.hbm [resolvable:$true] %s432
          %435 = dma.vmem_to_hbm [thread:$0]  %s431, 128, %s433, %s416
        $region48: #{tpu_custom_call.1} parent=31 // pred_fallthru
          _
      $region32: #{tpu_custom_call.1} parent=5 // pred_fallthru
        _
      %p436 = scmp.le.s32.totalorder 2, %s18
      // Predicated region
      $region49: #{tpu_custom_call.1} parent=5 // pred_check
        %p437 = pneg %p436
      $region50: #{tpu_custom_call.1} parent=5 // pred_check_branch
        %439 = sbr.rel (%p437) target = $region52
      $region51: #{tpu_custom_call.1} parent=5 // pred_region
        %s440 = ssub.s32 %s18, 2
        // Predicated region
        $region53: #{tpu_custom_call.1} parent=51 // pred_check
          %p441 = pneg %p139
        $region54: #{tpu_custom_call.1} parent=51 // pred_check_branch
          %443 = sbr.rel (%p441) target = $region56
        $region55: #{tpu_custom_call.1} parent=51 // pred_region
          %s444 = sand.u32 %s124, 1
          %s445 = scalar_lea.sflag [#allocation4], %s444
          %s446 = sand.u32 %s124, 1
          %s447 = smul.addr %s446, 8
          %s448 = scalar_lea.vmem [#allocation8], %s447
          %450 = dma.done %s445, 128
        $region56: #{tpu_custom_call.1} parent=51 // pred_fallthru
          _
      $region52: #{tpu_custom_call.1} parent=5 // pred_fallthru
        _
    $region6: #{tpu_custom_call.1} parent=1 // loop_footer
      %s22 = sadd.s32 1, %s18
    $region7: #{tpu_custom_call.1} parent=1 // loop_footer_branch
      %17 = sbr.rel target = $region3
    $region8: #{tpu_custom_call.1} parent=1 // loop_exit
      _
    %451 = vsyncpa [#allocation3], 1
    %s452 = scalar_lea.sflag [#allocation3], 1
    %453 = vsyncpa %s452, 1
    %454 = vsyncpa [#allocation6], 1
    %s455 = scalar_lea.sflag [#allocation6], 1
    %456 = vsyncpa %s455, 1
    %457 = vsyncpa [#allocation4], 1
    %s458 = scalar_lea.sflag [#allocation4], 1
    %459 = vsyncpa %s458, 1

</llo_original>
